<compile_context>
chip_gen: v7x
topology: tpu7x:2x2x1
jax: 0.10.0
libtpu: 0.0.40
codegen_flags: <defaults>
</compile_context>

<pallas_src>
import jax
import jax.numpy as jnp
from jax.experimental import pallas as pl
from jax.experimental.pallas import tpu as pltpu


def get_3x3_gaussian_weight2d(sigma):
    """Per-channel normalized 3x3 Gaussian weights. sigma: (C,) -> (C, 3, 3)."""
    coords = jnp.array([-1.0, 0.0, 1.0], dtype=jnp.float32)
    d2 = coords[:, None] ** 2 + coords[None, :] ** 2                      # (3, 3)
    s = sigma.astype(jnp.float32)
    g = jnp.exp(-d2[None, :, :] / (2.0 * (s[:, None, None] ** 2)))        # (C, 3, 3)
    return g / jnp.sum(g, axis=(1, 2), keepdims=True)


def _gaussian_taps_1d(sigma):
    """Separable per-channel 1-D taps, (C, 2) = [edge, center].

    outer(g1d, g1d) == get_3x3_gaussian_weight2d(sigma) exactly (same normalization),
    so a horizontal 3-tap pass followed by a vertical 3-tap pass reproduces the
    module's depthwise 3x3 conv.
    """
    s = sigma.astype(jnp.float32)
    e = jnp.exp(-1.0 / (2.0 * s * s))
    denom = 1.0 + 2.0 * e
    return jnp.stack([e / denom, 1.0 / denom], axis=-1)                   # (C, 2)


def _blur_kernel(taps_ref, x_ref, o_ref):
    # taps_ref: SMEM (C, 2) f32  — per-channel [edge, center] 1-D Gaussian taps
    # x_ref:    VMEM (H, W)      — one input plane (batch & channel dims squeezed)
    # o_ref:    VMEM (H, W)      — one output plane
    c = pl.program_id(1)
    ke = taps_ref[c, 0]                                   # edge tap (scalar)
    kc = taps_ref[c, 1]                                   # center tap (scalar)
    H, W = x_ref.shape

    x = x_ref[...].astype(jnp.float32)

    # Horizontal 3-tap pass (shift along the lane axis W; zero halo via concat).
    zcol = jnp.zeros((H, 1), jnp.float32)
    left = jnp.concatenate([zcol, x[:, : W - 1]], axis=1)                 # x[h, w-1]
    right = jnp.concatenate([x[:, 1:], zcol], axis=1)                     # x[h, w+1]
    hbuf = kc * x + ke * (left + right)

    # Vertical 3-tap pass (shift along the sublane axis H; zero halo via concat).
    zrow = jnp.zeros((1, W), jnp.float32)
    up = jnp.concatenate([zrow, hbuf[: H - 1, :]], axis=0)                # hbuf[h-1, w]
    down = jnp.concatenate([hbuf[1:, :], zrow], axis=0)                   # hbuf[h+1, w]

    o_ref[...] = (kc * hbuf + ke * (up + down)).astype(o_ref.dtype)


def gaussian_blur(x, sigma):
    """x: (N, C, H, W); sigma: (C,). Depthwise 3x3 Gaussian blur, stride=1, zero pad=1.

    Matches F.conv2d(x, get_3x3_gaussian_weight2d(sigma)[:, None], groups=C, padding=1).
    """
    N, C, H, W = x.shape
    taps = _gaussian_taps_1d(sigma)                                       # (C, 2) -> SMEM

    # Explicit scoped-VMEM budget: double-buffered in/out plane blocks plus a handful
    # of plane-sized f32 value temporaries, with headroom; capped at v7x physical VMEM.
    plane_bytes = H * W * jnp.dtype(x.dtype).itemsize
    vmem_limit = int(min(max(4 * plane_bytes + 12 * H * W * 4 + (4 << 20), 8 << 20),
                         64 << 20))

    return pl.pallas_call(
        _blur_kernel,
        out_shape=jax.ShapeDtypeStruct((N, C, H, W), x.dtype),
        grid_spec=pltpu.PrefetchScalarGridSpec(
            num_scalar_prefetch=1,
            grid=(N, C),
            in_specs=[pl.BlockSpec((None, None, H, W),
                                   lambda n, c, taps_ref: (n, c, 0, 0))],
            out_specs=pl.BlockSpec((None, None, H, W),
                                   lambda n, c, taps_ref: (n, c, 0, 0)),
        ),
        compiler_params=pltpu.CompilerParams(
            dimension_semantics=("parallel", "parallel"),
            vmem_limit_bytes=vmem_limit),
    )(taps, x)


def _reference(x, sigma):
    """Pure-JAX reference: depthwise 3x3 conv via lax.conv_general_dilated."""
    C = x.shape[1]
    w = get_3x3_gaussian_weight2d(sigma)                                  # (C, 3, 3)
    w4 = w[:, None, :, :]                                                 # (O=C, I/g=1, 3, 3)
    return jax.lax.conv_general_dilated(
        x, w4,
        window_strides=(1, 1),
        padding=((1, 1), (1, 1)),
        dimension_numbers=("NCHW", "OIHW", "NCHW"),
        feature_group_count=C,
    )


if __name__ == "__main__":
    key = jax.random.PRNGKey(0)
    N, C, H, W = 2, 4, 16, 16
    x = jax.random.normal(key, (N, C, H, W), dtype=jnp.float32)

    # Module __init__: sigma = torch.ones(channels) (learnable Parameter) -> deterministic.
    # NOTE: sigma ~ 0 would produce NaN/Inf weights; inherited from the module's formula.
    sigma = jnp.ones((C,), dtype=jnp.float32)

    out = jax.block_until_ready(gaussian_blur(x, sigma))
    ref = _reference(x, sigma)

    assert out.shape == (N, C, H, W)
    assert jnp.allclose(out, ref, atol=1e-5, rtol=1e-5)

    print("KERNEL_OK")
</pallas_src>

<mosaic_0001>
module attributes {stable_mosaic.version = 11 : i64} {
  func.func @_blur_kernel(%arg0: i32, %arg1: i32, %arg2: memref<4x2xf32, #tpu.memory_space<smem>>, %arg3: memref<1x1x16x16xf32, #tpu.memory_space<vmem>>, %arg4: memref<1x1x16x16xf32, #tpu.memory_space<vmem>>) attributes {dimension_semantics = [#tpu.dimension_semantics<parallel>, #tpu.dimension_semantics<parallel>], iteration_bounds = array<i64: 2, 4>, scalar_prefetch = 1 : i64, scratch_operands = 0 : i64, tpu.core_type = #tpu.core_type<tc>, window_params = [{transform_indices = @transform_0, window_bounds = array<i64: 1, 1, 16, 16>}, {transform_indices = @transform_1, window_bounds = array<i64: 1, 1, 16, 16>}]} {
    %0 = arith.index_cast %arg1 : i32 to index
    %c0 = arith.constant 0 : index
    %1 = memref.load %arg2[%0, %c0] : memref<4x2xf32, #tpu.memory_space<smem>>
    %2 = arith.index_cast %arg1 : i32 to index
    %c1 = arith.constant 1 : index
    %3 = memref.load %arg2[%2, %c1] : memref<4x2xf32, #tpu.memory_space<smem>>
    %c0_0 = arith.constant 0 : index
    %c0_1 = arith.constant 0 : index
    %c0_2 = arith.constant 0 : index
    %c0_3 = arith.constant 0 : index
    %4 = vector.load %arg3[%c0_0, %c0_1, %c0_2, %c0_3] : memref<1x1x16x16xf32, #tpu.memory_space<vmem>>, vector<1x1x16x16xf32>
    %5 = vector.shape_cast %4 : vector<1x1x16x16xf32> to vector<16x16xf32>
    %cst = arith.constant 0.000000e+00 : f32
    %6 = vector.broadcast %cst : f32 to vector<16x1xf32>
    %7 = vector.extract_strided_slice %5 {offsets = [0, 0], sizes = [16, 15], strides = [1, 1]} : vector<16x16xf32> to vector<16x15xf32>
    %8 = tpu.concatenate %6, %7 in 1 : vector<16x1xf32>, vector<16x15xf32> -> vector<16x16xf32>
    %9 = vector.extract_strided_slice %5 {offsets = [0, 1], sizes = [16, 15], strides = [1, 1]} : vector<16x16xf32> to vector<16x15xf32>
    %10 = tpu.concatenate %9, %6 in 1 : vector<16x15xf32>, vector<16x1xf32> -> vector<16x16xf32>
    %11 = vector.broadcast %3 : f32 to vector<16x16xf32>
    %12 = arith.mulf %11, %5 : vector<16x16xf32>
    %13 = arith.addf %8, %10 : vector<16x16xf32>
    %14 = vector.broadcast %1 : f32 to vector<16x16xf32>
    %15 = arith.mulf %14, %13 : vector<16x16xf32>
    %16 = arith.addf %12, %15 : vector<16x16xf32>
    %cst_4 = arith.constant 0.000000e+00 : f32
    %17 = vector.broadcast %cst_4 : f32 to vector<1x16xf32>
    %18 = vector.extract_strided_slice %16 {offsets = [0, 0], sizes = [15, 16], strides = [1, 1]} : vector<16x16xf32> to vector<15x16xf32>
    %19 = tpu.concatenate %17, %18 in 0 : vector<1x16xf32>, vector<15x16xf32> -> vector<16x16xf32>
    %20 = vector.extract_strided_slice %16 {offsets = [1, 0], sizes = [15, 16], strides = [1, 1]} : vector<16x16xf32> to vector<15x16xf32>
    %21 = tpu.concatenate %20, %17 in 0 : vector<15x16xf32>, vector<1x16xf32> -> vector<16x16xf32>
    %22 = vector.broadcast %3 : f32 to vector<16x16xf32>
    %23 = arith.mulf %22, %16 : vector<16x16xf32>
    %24 = arith.addf %19, %21 : vector<16x16xf32>
    %25 = vector.broadcast %1 : f32 to vector<16x16xf32>
    %26 = arith.mulf %25, %24 : vector<16x16xf32>
    %27 = arith.addf %23, %26 : vector<16x16xf32>
    %c0_5 = arith.constant 0 : index
    %c0_6 = arith.constant 0 : index
    %c0_7 = arith.constant 0 : index
    %c0_8 = arith.constant 0 : index
    %28 = vector.load %arg4[%c0_5, %c0_6, %c0_7, %c0_8] : memref<1x1x16x16xf32, #tpu.memory_space<vmem>>, vector<1x1x16x16xf32>
    %29 = vector.shape_cast %28 : vector<1x1x16x16xf32> to vector<16x16xf32>
    %30 = vector.shape_cast %27 : vector<16x16xf32> to vector<1x1x16x16xf32>
    tpu.vector_store %arg4[%c0_5, %c0_6, %c0_7, %c0_8], %30 {strides = array<i32>} : memref<1x1x16x16xf32, #tpu.memory_space<vmem>>, vector<1x1x16x16xf32>,
    return
  }
  func.func @transform_0(%arg0: i32, %arg1: i32, %arg2: memref<4x2xf32, #tpu.memory_space<smem>>) -> (i32, i32, i32, i32) {
    %c0_i32 = arith.constant 0 : i32
    %c0_i32_0 = arith.constant 0 : i32
    %c0_i32_1 = arith.constant 0 : i32
    return %arg0, %arg1, %c0_i32, %c0_i32_0 : i32, i32, i32, i32
  }
  func.func @transform_1(%arg0: i32, %arg1: i32, %arg2: memref<4x2xf32, #tpu.memory_space<smem>>) -> (i32, i32, i32, i32) {
    %c0_i32 = arith.constant 0 : i32
    %c0_i32_0 = arith.constant 0 : i32
    %c0_i32_1 = arith.constant 0 : i32
    return %arg0, %arg1, %c0_i32, %c0_i32_0 : i32, i32, i32, i32
  }
}

</mosaic_0001>

<llo_original>
// kernel: tpu_custom_call.1
$region0: #{tpu_custom_call.1}
  #allocation0 [shape = 'u32[]', space=smem, size = 0x4, offset = 0x4, fixed_abs, tag = 'smem constant byte address 0x4 - core index']
  #allocation1 [shape = 'u32[144,128]{1,0:T(1,128)}', space=vmem, size = 0x12000, scoped, tag = 'internal scratch']
  #allocation2 [shape = 's32[1]{0}', space=sflag, size = 0x4, scoped, tag = 'scoped memory for tpu_custom_call.1']
  #allocation3 [shape = 'u8[2048]{0}', space=smem, size = 0x800, scoped, tag = 'prefetched SMEM operand 0']
  %s0 = inlined_call_operand.vmem [shape: f32[4,2], index: 0, kind: input, shape index: {}]
  %s1 = inlined_call_operand.hbm [shape: f32[2,4,16,16], index: 1, kind: input, shape index: {}]
  %s2 = inlined_call_operand.hbm [shape: f32[2,4,16,16], index: 2, kind: output, shape index: {}]
  %s3 = sld [smem:[#allocation0]]
  $region41: #{tpu_custom_call.1} parent=0
    _
  %s5 = ssub.s32 1, %s3
  %s6 = scalar_select 0, %s5, %s3
  %s7 = sshll.u32 %s0, 4
  %s8 = int_to_ptr.vmem [resolvable:$true] %s7
  %10 = dma.vmem_to_smem %s8, 64, [#allocation3], [#allocation2]
  %11 = dma.done [#allocation2], 64
  %12 = sfence
  $region1: #{tpu_custom_call.1} parent=0
    #allocation4 [shape = 'u8[16384]{0}', space=vmem, size = 0x4000, scoped, tag = 'input window, operand 1']
    #allocation5 [shape = 's32[2]{0}', space=sflag, size = 0x8, scoped, tag = 'scoped memory for tpu_custom_call.1']
    #allocation6 [shape = 's32[2]{0}', space=sflag, size = 0x8, scoped, tag = 'scoped memory for tpu_custom_call.1']
    #allocation7 [shape = 'u8[16384]{0}', space=vmem, size = 0x4000, scoped, tag = 'output window, operand 0']
    %13 = vsyncpa [#allocation5], 0
    %s14 = scalar_lea.sflag [#allocation5], 1
    %15 = vsyncpa %s14, 0
    %16 = vsyncpa [#allocation6], 0
    %s17 = scalar_lea.sflag [#allocation6], 1
    %18 = vsyncpa %s17, 0
    loop: start=0, step=1, limit=10
    $region2: #{tpu_custom_call.1} parent=1 // loop_pre_header
      _
    $region3: #{tpu_custom_call.1} parent=1 // loop_header
      %s20 = sphi 0, %s24
      %p21 = scmp.ge.s32.totalorder %s20, 10
      %s27 = sphi 0, %s39
      %s28 = sphi 0, %s35
      %s29 = sphi 0, %s27
      %s30 = sphi 0, %s28
      %s31 = sphi 0, %s29
      %s32 = sphi 0, %s30
      %s44 = sphi 0, %s46
      %s47 = sphi 0, %s44
      %s48 = sphi 0, %s47
      %s64 = sphi 0, %s48
      %s72 = sphi 0, %s74
      %s75 = sphi 0, %s72
      %s76 = sphi 0, %s75
      %s92 = sphi 0, %s76
    $region4: #{tpu_custom_call.1} parent=1 // loop_header_branch
      %23 = sbr.rel (%p21) target = $region8
    $region5: #{tpu_custom_call.1} parent=1 // loop_body
      %s25 = ssub.s32 %s20, 1
      %s26 = ssub.s32 %s20, 2
      %s33 = sadd.s32 1, %s28
      %p34 = scmp.ge.s32.totalorder %s33, 4
      %s35 = scalar_select %p34, 0, %s33
      %s36 = sadd.s32 1, %s27
      %s37 = scalar_select %p34, %s36, %s27
      %p38 = scmp.ge.s32.totalorder %s37, 2
      %s39 = scalar_select %p38, 0, %s37
      %s40 = ssub.s32 %s27, %s39
      %s41 = ssub.s32 %s28, %s35
      %s42 = sor.u32 %s40, %s41
      %p43 = scmp.eq.s32.totalorder %s42, 0
      %s45 = sadd.s32 %s44, 1
      %s46 = scalar_select %p43, %s44, %s45
      %p49 = pneg %p43
      %p50 = scmp.eq.s32.totalorder %s20, 7
      %p51 = por %p49, %p50
      %p52 = scmp.ne.s32.totalorder %s44, %s47
      %p53 = scmp.eq.s32.totalorder %s20, 0
      %p54 = por %p52, %p53
      %p55 = scmp.ne.s32.totalorder %s44, %s47
      %p56 = scmp.eq.s32.totalorder %s25, 7
      %p57 = por %p55, %p56
      %p58 = scmp.ne.s32.totalorder %s47, %s48
      %p59 = scmp.eq.s32.totalorder %s25, 0
      %p60 = por %p58, %p59
      %p61 = scmp.ne.s32.totalorder %s47, %s48
      %p62 = scmp.eq.s32.totalorder %s26, 7
      %p63 = por %p61, %p62
      %p65 = scmp.ne.s32.totalorder %s48, %s64
      %p66 = scmp.eq.s32.totalorder %s26, 0
      %p67 = por %p65, %p66
      %s68 = ssub.s32 %s27, %s39
      %s69 = ssub.s32 %s28, %s35
      %s70 = sor.u32 %s68, %s69
      %p71 = scmp.eq.s32.totalorder %s70, 0
      %s73 = sadd.s32 %s72, 1
      %s74 = scalar_select %p71, %s72, %s73
      %p77 = pneg %p71
      %p78 = scmp.eq.s32.totalorder %s20, 7
      %p79 = por %p77, %p78
      %p80 = scmp.ne.s32.totalorder %s72, %s75
      %p81 = scmp.eq.s32.totalorder %s20, 0
      %p82 = por %p80, %p81
      %p83 = scmp.ne.s32.totalorder %s72, %s75
      %p84 = scmp.eq.s32.totalorder %s25, 7
      %p85 = por %p83, %p84
      %p86 = scmp.ne.s32.totalorder %s75, %s76
      %p87 = scmp.eq.s32.totalorder %s25, 0
      %p88 = por %p86, %p87
      %p89 = scmp.ne.s32.totalorder %s75, %s76
      %p90 = scmp.eq.s32.totalorder %s26, 7
      %p91 = por %p89, %p90
      %p93 = scmp.ne.s32.totalorder %s76, %s92
      %p94 = scmp.eq.s32.totalorder %s26, 0
      %p95 = por %p93, %p94
      %p96 = scmp.le.s32.totalorder 1, %s20
      %p97 = scmp.lt.s32.totalorder %s20, 9
      %p98 = pnand %p96, %p97
      %p99 = pneg %p98
      // Predicated region
      $region9: #{tpu_custom_call.1} parent=5 // pred_check
        _
      $region10: #{tpu_custom_call.1} parent=5 // pred_check_branch
        %101 = sbr.rel (%p98) target = $region12
      $region11: #{tpu_custom_call.1} parent=5 // pred_region
        %s102 = ssub.s32 %s20, 1
      $region12: #{tpu_custom_call.1} parent=5 // pred_fallthru
        _
      %p103 = scmp.lt.s32.totalorder %s20, 8
      // Predicated region
      $region13: #{tpu_custom_call.1} parent=5 // pred_check
        %p104 = pneg %p103
      $region14: #{tpu_custom_call.1} parent=5 // pred_check_branch
        %106 = sbr.rel (%p104) target = $region16
      $region15: #{tpu_custom_call.1} parent=5 // pred_region
        // Predicated region
        $region17: #{tpu_custom_call.1} parent=15 // pred_check
          %p107 = pneg %p54
        $region18: #{tpu_custom_call.1} parent=15 // pred_check_branch
          %109 = sbr.rel (%p107) target = $region20
        $region19: #{tpu_custom_call.1} parent=15 // pred_region
          %s110 = sand.u32 %s44, 1
          %s111 = scalar_lea.sflag [#allocation5], %s110
          %s112 = sand.u32 %s44, 1
          %s113 = smul.addr %s112, 16
          %s114 = scalar_lea.vmem [#allocation4], %s113
          %s116 = ssub.s32 256, 256
          %117 = vsyncadd %s111, %s116
          %s118 = smul.addr %s28, 2
          %s119 = smul.addr %s27, 8
          %s120 = sadd.s32 %s118, %s119
          %s121 = smul.addr %s120, 128
          %s122 = scalar_lea.hbm %s1, %s121
          %s123 = sshll.u32 %s114, 4
          %s124 = int_to_ptr.vmem [resolvable:$true] %s123
          %129 = dma.hbm_to_vmem [thread:$0]  %s122, 256, %s124, %s111, 128, 128, 8
        $region20: #{tpu_custom_call.1} parent=15 // pred_fallthru
          _
      $region16: #{tpu_custom_call.1} parent=5 // pred_fallthru
        _
      %p130 = scmp.le.s32.totalorder 1, %s20
      %p131 = scmp.lt.s32.totalorder %s20, 9
      %p132 = pnand %p130, %p131
      %p133 = pneg %p132
      // Predicated region
      $region21: #{tpu_custom_call.1} parent=5 // pred_check
        _
      $region22: #{tpu_custom_call.1} parent=5 // pred_check_branch
        %135 = sbr.rel (%p132) target = $region24
      $region23: #{tpu_custom_call.1} parent=5 // pred_region
        %s136 = ssub.s32 %s20, 1
        %s137 = sand.u32 %s47, 1
        %s138 = scalar_lea.sflag [#allocation5], %s137
        %s139 = sand.u32 %s47, 1
        %s140 = smul.addr %s139, 16
        %s141 = scalar_lea.vmem [#allocation4], %s140
        // Predicated region
        $region25: #{tpu_custom_call.1} parent=23 // pred_check
          %p142 = pneg %p60
        $region26: #{tpu_custom_call.1} parent=23 // pred_check_branch
          %144 = sbr.rel (%p142) target = $region28
        $region27: #{tpu_custom_call.1} parent=23 // pred_region
          %145 = dma.done %s138, 256
        $region28: #{tpu_custom_call.1} parent=23 // pred_fallthru
          _
        %s146 = sand.u32 %s47, 1
        %s147 = scalar_lea.sflag [#allocation5], %s146
        %s148 = sand.u32 %s47, 1
        %s149 = smul.addr %s148, 16
        %s150 = scalar_lea.vmem [#allocation4], %s149
        %p151 = pneg %p60
        %p152 = pneg %p57
        %p153 = pneg %p88
        %p154 = pneg %p85
        %s155 = sand.u32 %s75, 1
        %s156 = scalar_lea.sflag [#allocation6], %s155
        %s157 = sand.u32 %s75, 1
        %s158 = smul.addr %s157, 16
        %s159 = scalar_lea.vmem [#allocation7], %s158
        %s160 = smul.u32 %s30, 128
        %s161 = sld [smem:[#allocation3 + %s160]]
        %s162 = sadd.s32 %s160, 1
        %s163 = sld [smem:[#allocation3 + %s162]]
        %v164 = vld [vmem:[%s141] sm:$0xff]
        %v165 = vld [vmem:[%s141 + $0x8] sm:$0xff]
        %168 = vrot.lane.b32.xlu0 %v164, 1
        %v169 = vpop.permute.xlu0 %168
        %170 = vrot.lane.b32.xlu0 %v165, 1
        %v171 = vpop.permute.xlu0 %170
        %vm174 = vcmask 7168
        %v175 = vsel %vm174, 0.0, %v169
        %v176 = vsel %vm174, 0.0, %v171
        %177 = vrot.lane.b32.xlu0 %v164, 127
        %v178 = vpop.permute.xlu0 %177
        %179 = vrot.lane.b32.xlu0 %v165, 127
        %v180 = vpop.permute.xlu0 %179
        %vm183 = vcmask 121856
        %v184 = vsel %vm183, %v178, 0.0
        %v185 = vsel %vm183, %v180, 0.0
        %v186 = vstv %s163
        %v187 = vmul.f32 %v186, %v164
        %v188 = vmul.f32 %v186, %v165
        %v189 = vadd.f32 %v175, %v184
        %v190 = vadd.f32 %v176, %v185
        %v191 = vstv %s161
        %v192 = vmul.f32 %v191, %v189
        %v193 = vmul.f32 %v191, %v190
        %v194 = vadd.f32 %v187, %v192
        %v195 = vadd.f32 %v188, %v193
        %vm198 = vcmask 1040384
        %v199 = vrot.slane %v194, 7
        %v200 = vrot.slane %v195, 7
        %v201 = vsel %vm198, %v199, %v200
        %v204 = vsel %vm198, 0.0, %v199
        %vm205 = vcmask 1046528
        %v206 = vrot.slane %v194, 1
        %v207 = vrot.slane %v195, 1
        %v208 = vsel %vm205, %v206, %v207
        %v211 = vsel %vm205, %v207, 0.0
        %v212 = vmul.f32 %v186, %v194
        %v213 = vmul.f32 %v186, %v195
        %v214 = vadd.f32 %v204, %v208
        %v215 = vadd.f32 %v201, %v211
        %v216 = vmul.f32 %v191, %v214
        %v217 = vmul.f32 %v191, %v215
        %v218 = vadd.f32 %v212, %v216
        %v219 = vadd.f32 %v213, %v217
        %vm220 = vcmask 130048
        %221 = vst.msk [vmem:[%s159] sm:$0xff] %vm220, %v218
        %222 = vst.msk [vmem:[%s159 + $0x8] sm:$0xff] %vm220, %v219
        %s223 = sand.u32 %s75, 1
        %s224 = scalar_lea.sflag [#allocation6], %s223
        %s225 = sand.u32 %s75, 1
        %s226 = smul.addr %s225, 16
        %s227 = scalar_lea.vmem [#allocation7], %s226
        // Predicated region
        $region29: #{tpu_custom_call.1} parent=23 // pred_check
          %p228 = pneg %p85
        $region30: #{tpu_custom_call.1} parent=23 // pred_check_branch
          %230 = sbr.rel (%p228) target = $region32
        $region31: #{tpu_custom_call.1} parent=23 // pred_region
          %s232 = ssub.s32 256, 256
          %233 = vsyncadd %s224, %s232
          %s234 = smul.addr %s30, 2
          %s235 = smul.addr %s29, 8
          %s236 = sadd.s32 %s234, %s235
          %s237 = smul.addr %s236, 128
          %s238 = scalar_lea.hbm %s2, %s237
          %s239 = sshll.u32 %s227, 4
          %s240 = int_to_ptr.vmem [resolvable:$true] %s239
          %245 = dma.vmem_to_hbm [thread:$0]  %s240, 256, %s238, %s224, 128, 128, 8
        $region32: #{tpu_custom_call.1} parent=23 // pred_fallthru
          _
      $region24: #{tpu_custom_call.1} parent=5 // pred_fallthru
        _
      %p246 = scmp.le.s32.totalorder 2, %s20
      // Predicated region
      $region33: #{tpu_custom_call.1} parent=5 // pred_check
        %p247 = pneg %p246
      $region34: #{tpu_custom_call.1} parent=5 // pred_check_branch
        %249 = sbr.rel (%p247) target = $region36
      $region35: #{tpu_custom_call.1} parent=5 // pred_region
        %s250 = ssub.s32 %s20, 2
        // Predicated region
        $region37: #{tpu_custom_call.1} parent=35 // pred_check
          %p251 = pneg %p91
        $region38: #{tpu_custom_call.1} parent=35 // pred_check_branch
          %253 = sbr.rel (%p251) target = $region40
        $region39: #{tpu_custom_call.1} parent=35 // pred_region
          %s254 = sand.u32 %s76, 1
          %s255 = scalar_lea.sflag [#allocation6], %s254
          %s256 = sand.u32 %s76, 1
          %s257 = smul.addr %s256, 16
          %s258 = scalar_lea.vmem [#allocation7], %s257
          %259 = dma.done %s255, 256
        $region40: #{tpu_custom_call.1} parent=35 // pred_fallthru
          _
      $region36: #{tpu_custom_call.1} parent=5 // pred_fallthru
        _
    $region6: #{tpu_custom_call.1} parent=1 // loop_footer
      %s24 = sadd.s32 1, %s20
    $region7: #{tpu_custom_call.1} parent=1 // loop_footer_branch
      %19 = sbr.rel target = $region3
    $region8: #{tpu_custom_call.1} parent=1 // loop_exit
      _
    %260 = vsyncpa [#allocation5], 1
    %s261 = scalar_lea.sflag [#allocation5], 1
    %262 = vsyncpa %s261, 1
    %263 = vsyncpa [#allocation6], 1
    %s264 = scalar_lea.sflag [#allocation6], 1
    %265 = vsyncpa %s264, 1

</llo_original>
